<compile_context>
chip_gen: v7x
topology: tpu7x:2x2x1
jax: 0.10.0
libtpu: 0.0.40
codegen_flags: <defaults>
</compile_context>

<pallas_src>
import jax
import jax.numpy as jnp
from jax.experimental import pallas as pl
from jax.experimental.pallas import tpu as pltpu


def _round_up(x, m):
    return (x + m - 1) // m * m


def _pad2(a, rows, cols):
    return jnp.pad(a, ((0, rows - a.shape[0]), (0, cols - a.shape[1])))


def _make_kernel(hs_true, eps, compute_dtype):
    def kernel(x_ref, w1_ref, b1_ref, w2_ref, b2_ref,
               g_ref, be_ref, w3_ref, b3_ref, o_ref):
        # fc1 + ReLU  (bf16 operands, f32 MXU accumulation)
        x = x_ref[...].astype(compute_dtype)
        h = jnp.dot(x, w1_ref[...], preferred_element_type=jnp.float32) + b1_ref[...]
        h = jnp.maximum(h, 0.0)

        # fc2
        h = jnp.dot(h.astype(compute_dtype), w2_ref[...],
                    preferred_element_type=jnp.float32) + b2_ref[...]

        # LayerNorm over the TRUE hs_true features (torch eps=1e-5, biased variance).
        # Padded lanes of h are exactly zero (zero weight cols + zero bias), so the plain sum
        # already equals the sum over real features; divide by hs_true and mask the centered
        # values so padded lanes do not pollute the variance.
        hs_p = h.shape[-1]
        inv_n = 1.0 / float(hs_true)
        mean = jnp.sum(h, axis=-1, keepdims=True) * inv_n
        c = h - mean
        if hs_p != hs_true:
            mask = jax.lax.broadcasted_iota(jnp.int32, (1, hs_p), 1) < hs_true
            c = jnp.where(mask, c, 0.0)
        var = jnp.sum(c * c, axis=-1, keepdims=True) * inv_n
        h = c * jax.lax.rsqrt(var + eps)
        h = h * g_ref[...] + be_ref[...]

        # ReLU
        h = jnp.maximum(h, 0.0)

        # fc3 (lane-dense output store)
        o_ref[...] = (jnp.dot(h.astype(compute_dtype), w3_ref[...],
                              preferred_element_type=jnp.float32)
                      + b3_ref[...]).astype(o_ref.dtype)

    return kernel


def transition_net(x, params, *, batch_tile=256, compute_dtype=jnp.bfloat16):
    """Fused TransitionNet forward. params = (w1,b1,w2,b2,ln_w,ln_b,w3,b3), f32, (in,out) layout."""
    (w1, b1, w2, b2, ln_w, ln_b, w3, b3) = params
    in_dim, hs = w1.shape
    out_dim = w3.shape[1]
    batch = x.shape[0]

    # ---- padded / lane-friendly shapes -----------------------------------------------------
    hs_p = _round_up(hs, 128)            # lane-dense hidden dim (e.g. 500 -> 512)
    out_p = _round_up(out_dim, 128)      # lane-dense output stores (slice after the call)

    # Batch tile: multiple of 8, capped at batch_tile, then rebalanced so the last grid step
    # carries real work instead of being mostly padding (e.g. batch=300 -> 2 tiles of 152,
    # not 256 + 44-of-256).
    tb = min(int(batch_tile), _round_up(batch, 8))
    n_tiles = pl.cdiv(batch, tb)
    tb = _round_up(pl.cdiv(batch, n_tiles), 8)
    batch_p = n_tiles * tb

    # ---- pad + cast params (zero padding keeps the math identical) --------------------------
    w1p = _pad2(w1, in_dim, hs_p).astype(compute_dtype)
    b1p = _pad2(b1, 1, hs_p).astype(jnp.float32)
    w2p = _pad2(w2, hs_p, hs_p).astype(compute_dtype)
    b2p = _pad2(b2, 1, hs_p).astype(jnp.float32)
    gp = _pad2(ln_w, 1, hs_p).astype(jnp.float32)
    bep = _pad2(ln_b, 1, hs_p).astype(jnp.float32)
    w3p = _pad2(w3, hs_p, out_p).astype(compute_dtype)
    b3p = _pad2(b3, 1, out_p).astype(jnp.float32)
    xp = jnp.pad(x.astype(jnp.float32), ((0, batch_p - batch), (0, 0)))

    grid = (n_tiles,)

    x_spec = pl.BlockSpec((tb, in_dim), lambda i: (i, 0))
    out_spec = pl.BlockSpec((tb, out_p), lambda i: (i, 0))

    def resident(shape):  # params: same block every step -> stay VMEM-resident
        return pl.BlockSpec(shape, lambda i: (0, 0))

    in_specs = [
        x_spec,
        resident((in_dim, hs_p)), resident((1, hs_p)),
        resident((hs_p, hs_p)), resident((1, hs_p)),
        resident((1, hs_p)), resident((1, hs_p)),
        resident((hs_p, out_p)), resident((1, out_p)),
    ]

    # ---- VMEM budget (conservative; cap well under v7x's 64 MiB physical) -------------------
    csz = jnp.dtype(compute_dtype).itemsize
    param_bytes = ((in_dim * hs_p + hs_p * hs_p + hs_p * out_p) * csz
                   + (5 * hs_p + out_p) * 4)
    io_bytes = 2 * tb * (in_dim + out_p) * 4          # double-buffered x / out tiles
    interm_bytes = 4 * tb * hs_p * 4                  # f32 intermediates headroom
    est = 2 * param_bytes + io_bytes + interm_bytes
    vmem_limit = int(min(max(2 * est + (4 << 20), 32 << 20), 48 << 20))

    # ---- cost estimate for the whole call ----------------------------------------------------
    flops = 2 * batch_p * (in_dim * hs_p + hs_p * hs_p + hs_p * out_p)
    hbm_bytes = (xp.size * 4 + batch_p * out_p * 4 + int(param_bytes))
    cost = pl.CostEstimate(flops=int(flops), transcendentals=int(batch_p),
                           bytes_accessed=int(hbm_bytes))

    out = pl.pallas_call(
        _make_kernel(hs, 1e-5, compute_dtype),
        out_shape=jax.ShapeDtypeStruct((batch_p, out_p), jnp.float32),
        grid=grid,
        in_specs=in_specs,
        out_specs=out_spec,
        compiler_params=pltpu.CompilerParams(
            dimension_semantics=("parallel",),
            vmem_limit_bytes=vmem_limit,
        ),
        cost_estimate=cost,
    )(xp, w1p, b1p, w2p, b2p, gp, bep, w3p, b3p)

    return out[:batch, :out_dim]


def init_params(key, ns, na, latent_dim, hs, cov_type="diag"):
    in_dim = ns + na + latent_dim
    if cov_type == "diag":
        out_dim = 2 * ns
    elif cov_type == "scalar":
        out_dim = ns + 1
    elif cov_type == "fixed":
        out_dim = ns
    else:
        raise ValueError("unsupported cov_type for this synthetic kernel")
    # TODO(synk): cov_type='dense' in the original module uses a non-integer output size
    # (ns + ns*(ns+1)/2 as a float) and is not implemented here.

    ks = jax.random.split(key, 6)

    def linear(kw, kb, fan_in, fan_out):
        bound = 1.0 / jnp.sqrt(fan_in)
        w = jax.random.uniform(kw, (fan_in, fan_out), jnp.float32, -bound, bound)
        b = jax.random.uniform(kb, (1, fan_out), jnp.float32, -bound, bound)
        return w, b

    w1, b1 = linear(ks[0], ks[1], in_dim, hs)
    w2, b2 = linear(ks[2], ks[3], hs, hs)
    w3, b3 = linear(ks[4], ks[5], hs, out_dim)
    ln_w = jnp.ones((1, hs), jnp.float32)
    ln_b = jnp.zeros((1, hs), jnp.float32)
    return (w1, b1, w2, b2, ln_w, ln_b, w3, b3)


def reference(x, params, compute_dtype=jnp.bfloat16):
    """Pure-JAX reference mirroring the kernel's numerics (bf16 matmul operands, f32 accum/LN)."""
    (w1, b1, w2, b2, ln_w, ln_b, w3, b3) = params
    cd = compute_dtype
    h = jnp.dot(x.astype(cd), w1.astype(cd), preferred_element_type=jnp.float32) + b1
    h = jnp.maximum(h, 0.0)
    h = jnp.dot(h.astype(cd), w2.astype(cd), preferred_element_type=jnp.float32) + b2
    mean = jnp.mean(h, axis=-1, keepdims=True)
    var = jnp.mean((h - mean) ** 2, axis=-1, keepdims=True)
    h = (h - mean) * jax.lax.rsqrt(var + 1e-5) * ln_w + ln_b
    h = jnp.maximum(h, 0.0)
    return jnp.dot(h.astype(cd), w3.astype(cd), preferred_element_type=jnp.float32) + b3


if __name__ == "__main__":
    # Small shapes consistent with the module (hs defaults to 500 in the ctor; small here).
    ns, na, latent_dim, hs = 4, 2, 3, 32
    batch = 8
    key = jax.random.PRNGKey(0)
    kx, kp = jax.random.split(key)

    params = init_params(kp, ns, na, latent_dim, hs, cov_type="diag")
    x = jax.random.normal(kx, (batch, ns + na + latent_dim), jnp.float32)

    out = transition_net(x, params)
    out = jax.block_until_ready(out)

    ref = reference(x, params)
    assert out.shape == (batch, 2 * ns), out.shape
    max_err = float(jnp.max(jnp.abs(out - ref)))
    assert jnp.allclose(out, ref, atol=1e-3, rtol=1e-3), max_err

    print("KERNEL_OK")
</pallas_src>

<mosaic_0001>
module attributes {stable_mosaic.version = 11 : i64} {
  func.func @kernel(%arg0: i32, %arg1: memref<8x9xf32, #tpu.memory_space<vmem>>, %arg2: memref<9x128xbf16, #tpu.memory_space<vmem>>, %arg3: memref<1x128xf32, #tpu.memory_space<vmem>>, %arg4: memref<128x128xbf16, #tpu.memory_space<vmem>>, %arg5: memref<1x128xf32, #tpu.memory_space<vmem>>, %arg6: memref<1x128xf32, #tpu.memory_space<vmem>>, %arg7: memref<1x128xf32, #tpu.memory_space<vmem>>, %arg8: memref<128x128xbf16, #tpu.memory_space<vmem>>, %arg9: memref<1x128xf32, #tpu.memory_space<vmem>>, %arg10: memref<8x128xf32, #tpu.memory_space<vmem>>) attributes {dimension_semantics = [#tpu.dimension_semantics<parallel>], iteration_bounds = array<i64: 1>, scalar_prefetch = 0 : i64, scratch_operands = 0 : i64, tpu.core_type = #tpu.core_type<tc>, window_params = [{transform_indices = @transform_0, window_bounds = array<i64: 8, 9>}, {pipeline_mode = #tpu.pipeline_mode<synchronous>, transform_indices = @transform_1, window_bounds = array<i64: 9, 128>}, {pipeline_mode = #tpu.pipeline_mode<synchronous>, transform_indices = @transform_2, window_bounds = array<i64: 1, 128>}, {pipeline_mode = #tpu.pipeline_mode<synchronous>, transform_indices = @transform_3, window_bounds = array<i64: 128, 128>}, {pipeline_mode = #tpu.pipeline_mode<synchronous>, transform_indices = @transform_4, window_bounds = array<i64: 1, 128>}, {pipeline_mode = #tpu.pipeline_mode<synchronous>, transform_indices = @transform_5, window_bounds = array<i64: 1, 128>}, {pipeline_mode = #tpu.pipeline_mode<synchronous>, transform_indices = @transform_6, window_bounds = array<i64: 1, 128>}, {pipeline_mode = #tpu.pipeline_mode<synchronous>, transform_indices = @transform_7, window_bounds = array<i64: 128, 128>}, {pipeline_mode = #tpu.pipeline_mode<synchronous>, transform_indices = @transform_8, window_bounds = array<i64: 1, 128>}, {transform_indices = @transform_9, window_bounds = array<i64: 8, 128>}]} {
    %c0 = arith.constant 0 : index
    %c0_0 = arith.constant 0 : index
    %0 = vector.load %arg1[%c0, %c0_0] : memref<8x9xf32, #tpu.memory_space<vmem>>, vector<8x9xf32>
    %1 = arith.truncf %0 : vector<8x9xf32> to vector<8x9xbf16>
    %c0_1 = arith.constant 0 : index
    %c0_2 = arith.constant 0 : index
    %2 = vector.load %arg2[%c0_1, %c0_2] : memref<9x128xbf16, #tpu.memory_space<vmem>>, vector<9x128xbf16>
    %cst = arith.constant dense<0.000000e+00> : vector<8x128xf32>
    %3 = tpu.matmul %1, %2, %cst {dimension_numbers = #tpu.dot_dimension_numbers<[1], [0], [0], [1], [0, 0, 1, 1], [], []>} : vector<8x9xbf16>, vector<9x128xbf16>, vector<8x128xf32> -> vector<8x128xf32>
    %c0_3 = arith.constant 0 : index
    %c0_4 = arith.constant 0 : index
    %4 = vector.load %arg3[%c0_3, %c0_4] : memref<1x128xf32, #tpu.memory_space<vmem>>, vector<1x128xf32>
    %5 = vector.broadcast %4 : vector<1x128xf32> to vector<8x128xf32>
    %6 = arith.addf %3, %5 : vector<8x128xf32>
    %cst_5 = arith.constant 0.000000e+00 : f32
    %7 = vector.broadcast %cst_5 : f32 to vector<8x128xf32>
    %8 = arith.maximumf %6, %7 : vector<8x128xf32>
    %9 = arith.truncf %8 : vector<8x128xf32> to vector<8x128xbf16>
    %c0_6 = arith.constant 0 : index
    %c0_7 = arith.constant 0 : index
    %10 = vector.load %arg4[%c0_6, %c0_7] : memref<128x128xbf16, #tpu.memory_space<vmem>>, vector<128x128xbf16>
    %cst_8 = arith.constant dense<0.000000e+00> : vector<8x128xf32>
    %11 = tpu.matmul %9, %10, %cst_8 {dimension_numbers = #tpu.dot_dimension_numbers<[1], [0], [0], [1], [0, 0, 1, 1], [], []>} : vector<8x128xbf16>, vector<128x128xbf16>, vector<8x128xf32> -> vector<8x128xf32>
    %c0_9 = arith.constant 0 : index
    %c0_10 = arith.constant 0 : index
    %12 = vector.load %arg5[%c0_9, %c0_10] : memref<1x128xf32, #tpu.memory_space<vmem>>, vector<1x128xf32>
    %13 = vector.broadcast %12 : vector<1x128xf32> to vector<8x128xf32>
    %14 = arith.addf %11, %13 : vector<8x128xf32>
    %cst_11 = arith.constant dense<0.000000e+00> : vector<8xf32>
    %15 = vector.multi_reduction <add>, %14, %cst_11 [1] : vector<8x128xf32> to vector<8xf32>
    %16 = vector.shape_cast %15 : vector<8xf32> to vector<8x1xf32>
    %cst_12 = arith.constant 3.125000e-02 : f32
    %17 = vector.broadcast %cst_12 : f32 to vector<8x1xf32>
    %18 = arith.mulf %16, %17 : vector<8x1xf32>
    %19 = vector.broadcast %18 : vector<8x1xf32> to vector<8x128xf32>
    %20 = arith.subf %14, %19 : vector<8x128xf32>
    %21 = tpu.iota {dimensions = array<i32: 1>} : vector<1x128xi32>
    %c32_i32 = arith.constant 32 : i32
    %22 = vector.broadcast %c32_i32 : i32 to vector<1x128xi32>
    %23 = arith.cmpi slt, %21, %22 : vector<1x128xi32>
    %cst_13 = arith.constant 0.000000e+00 : f32
    %24 = vector.shape_cast %23 : vector<1x128xi1> to vector<1x128xi1>
    %25 = vector.broadcast %24 : vector<1x128xi1> to vector<8x128xi1>
    %26 = vector.broadcast %cst_13 : f32 to vector<8x128xf32>
    %27 = arith.select %25, %20, %26 : vector<8x128xi1>, vector<8x128xf32>
    %28 = arith.mulf %27, %27 : vector<8x128xf32>
    %cst_14 = arith.constant dense<0.000000e+00> : vector<8xf32>
    %29 = vector.multi_reduction <add>, %28, %cst_14 [1] : vector<8x128xf32> to vector<8xf32>
    %30 = vector.shape_cast %29 : vector<8xf32> to vector<8x1xf32>
    %cst_15 = arith.constant 3.125000e-02 : f32
    %31 = vector.broadcast %cst_15 : f32 to vector<8x1xf32>
    %32 = arith.mulf %30, %31 : vector<8x1xf32>
    %cst_16 = arith.constant 9.99999974E-6 : f32
    %33 = vector.broadcast %cst_16 : f32 to vector<8x1xf32>
    %34 = arith.addf %32, %33 : vector<8x1xf32>
    %35 = math.rsqrt %34 : vector<8x1xf32>
    %36 = vector.broadcast %35 : vector<8x1xf32> to vector<8x128xf32>
    %37 = arith.mulf %27, %36 : vector<8x128xf32>
    %c0_17 = arith.constant 0 : index
    %c0_18 = arith.constant 0 : index
    %38 = vector.load %arg6[%c0_17, %c0_18] : memref<1x128xf32, #tpu.memory_space<vmem>>, vector<1x128xf32>
    %39 = vector.broadcast %38 : vector<1x128xf32> to vector<8x128xf32>
    %40 = arith.mulf %37, %39 : vector<8x128xf32>
    %c0_19 = arith.constant 0 : index
    %c0_20 = arith.constant 0 : index
    %41 = vector.load %arg7[%c0_19, %c0_20] : memref<1x128xf32, #tpu.memory_space<vmem>>, vector<1x128xf32>
    %42 = vector.broadcast %41 : vector<1x128xf32> to vector<8x128xf32>
    %43 = arith.addf %40, %42 : vector<8x128xf32>
    %cst_21 = arith.constant 0.000000e+00 : f32
    %44 = vector.broadcast %cst_21 : f32 to vector<8x128xf32>
    %45 = arith.maximumf %43, %44 : vector<8x128xf32>
    %46 = arith.truncf %45 : vector<8x128xf32> to vector<8x128xbf16>
    %c0_22 = arith.constant 0 : index
    %c0_23 = arith.constant 0 : index
    %47 = vector.load %arg8[%c0_22, %c0_23] : memref<128x128xbf16, #tpu.memory_space<vmem>>, vector<128x128xbf16>
    %cst_24 = arith.constant dense<0.000000e+00> : vector<8x128xf32>
    %48 = tpu.matmul %46, %47, %cst_24 {dimension_numbers = #tpu.dot_dimension_numbers<[1], [0], [0], [1], [0, 0, 1, 1], [], []>} : vector<8x128xbf16>, vector<128x128xbf16>, vector<8x128xf32> -> vector<8x128xf32>
    %c0_25 = arith.constant 0 : index
    %c0_26 = arith.constant 0 : index
    %49 = vector.load %arg9[%c0_25, %c0_26] : memref<1x128xf32, #tpu.memory_space<vmem>>, vector<1x128xf32>
    %50 = vector.broadcast %49 : vector<1x128xf32> to vector<8x128xf32>
    %51 = arith.addf %48, %50 : vector<8x128xf32>
    %c0_27 = arith.constant 0 : index
    %c0_28 = arith.constant 0 : index
    %52 = vector.load %arg10[%c0_27, %c0_28] : memref<8x128xf32, #tpu.memory_space<vmem>>, vector<8x128xf32>
    tpu.vector_store %arg10[%c0_27, %c0_28], %51 {strides = array<i32>} : memref<8x128xf32, #tpu.memory_space<vmem>>, vector<8x128xf32>,
    return
  }
  func.func @transform_0(%arg0: i32) -> (i32, i32) {
    %c0_i32 = arith.constant 0 : i32
    %c0_i32_0 = arith.constant 0 : i32
    return %arg0, %c0_i32 : i32, i32
  }
  func.func @transform_1(%arg0: i32) -> (i32, i32) {
    %c0_i32 = arith.constant 0 : i32
    %c0_i32_0 = arith.constant 0 : i32
    %c0_i32_1 = arith.constant 0 : i32
    return %c0_i32, %c0_i32_0 : i32, i32
  }
  func.func @transform_2(%arg0: i32) -> (i32, i32) {
    %c0_i32 = arith.constant 0 : i32
    %c0_i32_0 = arith.constant 0 : i32
    %c0_i32_1 = arith.constant 0 : i32
    return %c0_i32, %c0_i32_0 : i32, i32
  }
  func.func @transform_3(%arg0: i32) -> (i32, i32) {
    %c0_i32 = arith.constant 0 : i32
    %c0_i32_0 = arith.constant 0 : i32
    %c0_i32_1 = arith.constant 0 : i32
    return %c0_i32, %c0_i32_0 : i32, i32
  }
  func.func @transform_4(%arg0: i32) -> (i32, i32) {
    %c0_i32 = arith.constant 0 : i32
    %c0_i32_0 = arith.constant 0 : i32
    %c0_i32_1 = arith.constant 0 : i32
    return %c0_i32, %c0_i32_0 : i32, i32
  }
  func.func @transform_5(%arg0: i32) -> (i32, i32) {
    %c0_i32 = arith.constant 0 : i32
    %c0_i32_0 = arith.constant 0 : i32
    %c0_i32_1 = arith.constant 0 : i32
    return %c0_i32, %c0_i32_0 : i32, i32
  }
  func.func @transform_6(%arg0: i32) -> (i32, i32) {
    %c0_i32 = arith.constant 0 : i32
    %c0_i32_0 = arith.constant 0 : i32
    %c0_i32_1 = arith.constant 0 : i32
    return %c0_i32, %c0_i32_0 : i32, i32
  }
  func.func @transform_7(%arg0: i32) -> (i32, i32) {
    %c0_i32 = arith.constant 0 : i32
    %c0_i32_0 = arith.constant 0 : i32
    %c0_i32_1 = arith.constant 0 : i32
    return %c0_i32, %c0_i32_0 : i32, i32
  }
  func.func @transform_8(%arg0: i32) -> (i32, i32) {
    %c0_i32 = arith.constant 0 : i32
    %c0_i32_0 = arith.constant 0 : i32
    %c0_i32_1 = arith.constant 0 : i32
    return %c0_i32, %c0_i32_0 : i32, i32
  }
  func.func @transform_9(%arg0: i32) -> (i32, i32) {
    %c0_i32 = arith.constant 0 : i32
    %c0_i32_0 = arith.constant 0 : i32
    return %arg0, %c0_i32 : i32, i32
  }
}

</mosaic_0001>

<llo_original>
// kernel: tpu_custom_call.1
$region0: #{tpu_custom_call.1}
  #allocation0 [shape = 'u32[]', space=smem, size = 0x4, offset = 0x4, fixed_abs, tag = 'smem constant byte address 0x4 - core index']
  #allocation1 [shape = 'u32[144,128]{1,0:T(1,128)}', space=vmem, size = 0x12000, scoped, tag = 'internal scratch']
  %s0 = inlined_call_operand.hbm [shape: f32[8,9], index: 0, kind: input, shape index: {}]
  %s1 = inlined_call_operand.hbm [shape: bf16[9,128], index: 1, kind: input, shape index: {}]
  %s2 = inlined_call_operand.vmem [shape: f32[1,128], index: 2, kind: input, shape index: {}]
  %s3 = inlined_call_operand.hbm [shape: bf16[128,128], index: 3, kind: input, shape index: {}]
  %s4 = inlined_call_operand.vmem [shape: f32[1,128], index: 4, kind: input, shape index: {}]
  %s5 = inlined_call_operand.vmem [shape: f32[1,128], index: 5, kind: input, shape index: {}]
  %s6 = inlined_call_operand.vmem [shape: f32[1,128], index: 6, kind: input, shape index: {}]
  %s7 = inlined_call_operand.hbm [shape: bf16[128,128], index: 7, kind: input, shape index: {}]
  %s8 = inlined_call_operand.vmem [shape: f32[1,128], index: 8, kind: input, shape index: {}]
  %s9 = inlined_call_operand.hbm [shape: f32[8,128], index: 9, kind: output, shape index: {}]
  %s10 = sld [smem:[#allocation0]]
  $region62: #{tpu_custom_call.1} parent=0
    _
  %s12 = ssub.s32 1, %s10
  %s13 = scalar_select 0, %s12, %s10
  $region1: #{tpu_custom_call.1} parent=0
    #allocation2 [shape = 'u8[4096]{0}', space=vmem, size = 0x1000, scoped, tag = 'input window, operand 0, single buffered']
    #allocation3 [shape = 's32[1]{0}', space=sflag, size = 0x4, scoped, tag = 'scoped memory for tpu_custom_call.1']
    #allocation4 [shape = 's32[1]{0}', space=sflag, size = 0x4, scoped, tag = 'scoped memory for tpu_custom_call.1']
    #allocation5 [shape = 'u8[4096]{0}', space=vmem, size = 0x1000, scoped, tag = 'input window, operand 1, single buffered']
    #allocation6 [shape = 's32[1]{0}', space=sflag, size = 0x4, scoped, tag = 'scoped memory for tpu_custom_call.1']
    #allocation7 [shape = 'u8[32768]{0}', space=vmem, size = 0x8000, scoped, tag = 'input window, operand 3, single buffered']
    #allocation8 [shape = 'u8[32768]{0}', space=vmem, size = 0x8000, scoped, tag = 'input window, operand 7, single buffered']
    #allocation9 [shape = 's32[1]{0}', space=sflag, size = 0x4, scoped, tag = 'scoped memory for tpu_custom_call.1']
    #allocation10 [shape = 'u8[4096]{0}', space=vmem, size = 0x1000, scoped, tag = 'output window, operand 0, single buffered']
    %14 = vsyncpa [#allocation3], 0
    %15 = vsyncpa [#allocation6], 0
    %16 = vsyncpa [#allocation9], 0
    %17 = vsyncpa [#allocation4], 0
    // Predicated region
    $region2: #{tpu_custom_call.1} parent=1 // pred_check
      _
    $region3: #{tpu_custom_call.1} parent=1 // pred_check_branch
      %19 = sbr.rel (0) target = $region5
    $region4: #{tpu_custom_call.1} parent=1 // pred_region
      %s21 = ssub.s32 128, 128
      %22 = vsyncadd [#allocation3], %s21
      %s24 = sshll.u32 [#allocation2], 4
      %s25 = int_to_ptr.vmem [resolvable:$true] %s24
      %27 = dma.hbm_to_vmem [thread:$0]  %s0, 128, %s25, [#allocation3]
    $region5: #{tpu_custom_call.1} parent=1 // pred_fallthru
      _
    // Predicated region
    $region6: #{tpu_custom_call.1} parent=1 // pred_check
      _
    $region7: #{tpu_custom_call.1} parent=1 // pred_check_branch
      %29 = sbr.rel (0) target = $region9
    $region8: #{tpu_custom_call.1} parent=1 // pred_region
      %s31 = ssub.s32 128, 128
      %32 = vsyncadd [#allocation6], %s31
      %s33 = sshll.u32 [#allocation5], 4
      %s34 = int_to_ptr.vmem [resolvable:$true] %s33
      %39 = dma.hbm_to_vmem [thread:$0]  %s1, 128, %s34, [#allocation6], 64, 64, 4
    $region9: #{tpu_custom_call.1} parent=1 // pred_fallthru
      _
    // Predicated region
    $region10: #{tpu_custom_call.1} parent=1 // pred_check
      _
    $region11: #{tpu_custom_call.1} parent=1 // pred_check_branch
      %41 = sbr.rel (0) target = $region13
    $region12: #{tpu_custom_call.1} parent=1 // pred_region
      _
    $region13: #{tpu_custom_call.1} parent=1 // pred_fallthru
      _
    // Predicated region
    $region14: #{tpu_custom_call.1} parent=1 // pred_check
      _
    $region15: #{tpu_custom_call.1} parent=1 // pred_check_branch
      %43 = sbr.rel (0) target = $region17
    $region16: #{tpu_custom_call.1} parent=1 // pred_region
      %s45 = ssub.s32 1024, 1024
      %46 = vsyncadd [#allocation6], %s45
      %s47 = sshll.u32 [#allocation7], 4
      %s48 = int_to_ptr.vmem [resolvable:$true] %s47
      %53 = dma.hbm_to_vmem [thread:$0]  %s3, 1024, %s48, [#allocation6], 64, 64, 4
    $region17: #{tpu_custom_call.1} parent=1 // pred_fallthru
      _
    // Predicated region
    $region18: #{tpu_custom_call.1} parent=1 // pred_check
      _
    $region19: #{tpu_custom_call.1} parent=1 // pred_check_branch
      %55 = sbr.rel (0) target = $region21
    $region20: #{tpu_custom_call.1} parent=1 // pred_region
      _
    $region21: #{tpu_custom_call.1} parent=1 // pred_fallthru
      _
    // Predicated region
    $region22: #{tpu_custom_call.1} parent=1 // pred_check
      _
    $region23: #{tpu_custom_call.1} parent=1 // pred_check_branch
      %57 = sbr.rel (0) target = $region25
    $region24: #{tpu_custom_call.1} parent=1 // pred_region
      _
    $region25: #{tpu_custom_call.1} parent=1 // pred_fallthru
      _
    // Predicated region
    $region26: #{tpu_custom_call.1} parent=1 // pred_check
      _
    $region27: #{tpu_custom_call.1} parent=1 // pred_check_branch
      %59 = sbr.rel (0) target = $region29
    $region28: #{tpu_custom_call.1} parent=1 // pred_region
      _
    $region29: #{tpu_custom_call.1} parent=1 // pred_fallthru
      _
    // Predicated region
    $region30: #{tpu_custom_call.1} parent=1 // pred_check
      _
    $region31: #{tpu_custom_call.1} parent=1 // pred_check_branch
      %61 = sbr.rel (0) target = $region33
    $region32: #{tpu_custom_call.1} parent=1 // pred_region
      %s63 = ssub.s32 1024, 1024
      %64 = vsyncadd [#allocation9], %s63
      %s65 = sshll.u32 [#allocation8], 4
      %s66 = int_to_ptr.vmem [resolvable:$true] %s65
      %71 = dma.hbm_to_vmem [thread:$0]  %s7, 1024, %s66, [#allocation9], 64, 64, 4
    $region33: #{tpu_custom_call.1} parent=1 // pred_fallthru
      _
    // Predicated region
    $region34: #{tpu_custom_call.1} parent=1 // pred_check
      _
    $region35: #{tpu_custom_call.1} parent=1 // pred_check_branch
      %73 = sbr.rel (0) target = $region37
    $region36: #{tpu_custom_call.1} parent=1 // pred_region
      _
    $region37: #{tpu_custom_call.1} parent=1 // pred_fallthru
      _
    // Predicated region
    $region38: #{tpu_custom_call.1} parent=1 // pred_check
      _
    $region39: #{tpu_custom_call.1} parent=1 // pred_check_branch
      %75 = sbr.rel (0) target = $region41
    $region40: #{tpu_custom_call.1} parent=1 // pred_region
      %76 = dma.done [#allocation3], 128
    $region41: #{tpu_custom_call.1} parent=1 // pred_fallthru
      _
    // Predicated region
    $region42: #{tpu_custom_call.1} parent=1 // pred_check
      _
    $region43: #{tpu_custom_call.1} parent=1 // pred_check_branch
      %78 = sbr.rel (0) target = $region45
    $region44: #{tpu_custom_call.1} parent=1 // pred_region
      %79 = dma.done [#allocation6], 128
    $region45: #{tpu_custom_call.1} parent=1 // pred_fallthru
      _
    // Predicated region
    $region46: #{tpu_custom_call.1} parent=1 // pred_check
      _
    $region47: #{tpu_custom_call.1} parent=1 // pred_check_branch
      %81 = sbr.rel (0) target = $region49
    $region48: #{tpu_custom_call.1} parent=1 // pred_region
      %82 = dma.done [#allocation6], 1024
    $region49: #{tpu_custom_call.1} parent=1 // pred_fallthru
      _
    // Predicated region
    $region50: #{tpu_custom_call.1} parent=1 // pred_check
      _
    $region51: #{tpu_custom_call.1} parent=1 // pred_check_branch
      %84 = sbr.rel (0) target = $region53
    $region52: #{tpu_custom_call.1} parent=1 // pred_region
      %85 = dma.done [#allocation9], 1024
    $region53: #{tpu_custom_call.1} parent=1 // pred_fallthru
      _
    %v87 = vld [vmem:[#allocation2] sm:$0xff]
    %v88 = vpack.c.bf16 %v87, %v87
    %v89 = vld [vmem:[#allocation5] sm:$0xf]
    %v90 = vld [vmem:[#allocation5 + $0x4] sm:$0x1]
    %v91 = vld [vmem:[%s2] sm:$0x1]
    %v93 = vlaneseq
    %v94 = vshrl.u32 %v93, 7
    %v95 = vsub.s32 0, %v94
    %v96 = vrot.slane %v91, %v95
    %v100 = vunpack.c.l.b16 %v89
    %v101 = vunpack.c.l.b16 %v90
    %v102 = vpack.c.b16 %v101, %v100
    %vm103 = vcmask 72704
    %v105 = vsel %vm103, %v88, 0
    %vm107 = vcmask 1043456
    %vm108 = vcmask 1044480
    %v109 = vsel %vm107, 4294967295, 65535
    %v110 = vsel %vm108, %v109, 0
    %v112 = vand.u32 %v102, %v110
    %114 = vmatprep.subr.bf16.mxu0 0
    %115 = vmatpush1.bf16.msra.mxu0 %v112
    %116 = vmatprep.subr.bf16.mxu0 0
    %117 = vmatpush1.bf16.msra.mxu0 0
    %118 = vmatprep.subr.bf16.mxu0 0
    %119 = vmatpush1.bf16.msra.mxu0 0
    %120 = vmatprep.subr.bf16.mxu0 0
    %121 = vmatpush1.bf16.msra.mxu0 0
    %122 = vmatprep.subr.bf16.mxu0 0
    %123 = vmatpush1.bf16.msra.mxu0 0
    %124 = vmatprep.subr.bf16.mxu0 0
    %125 = vmatpush1.bf16.msra.mxu0 0
    %126 = vmatprep.subr.bf16.mxu0 0
    %127 = vmatpush1.bf16.msra.mxu0 0
    %128 = vmatprep.subr.bf16.mxu0 0
    %129 = vmatpush1.bf16.msra.mxu0 0
    %130 = vmatprep.subr.bf16.mxu0 0
    %131 = vmatpush1.bf16.msra.mxu0 0
    %132 = vmatprep.subr.bf16.mxu0 0
    %133 = vmatpush1.bf16.msra.mxu0 0
    %134 = vmatprep.subr.bf16.mxu0 0
    %135 = vmatpush1.bf16.msra.mxu0 0
    %136 = vmatprep.subr.bf16.mxu0 0
    %137 = vmatpush1.bf16.msra.mxu0 0
    %138 = vmatprep.subr.bf16.mxu0 0
    %139 = vmatpush1.bf16.msra.mxu0 0
    %140 = vmatprep.subr.bf16.mxu0 0
    %141 = vmatpush1.bf16.msra.mxu0 0
    %142 = vmatprep.subr.bf16.mxu0 0
    %143 = vmatpush1.bf16.msra.mxu0 0
    %144 = vmatprep.subr.bf16.mxu0 0
    %145 = vmatpush1.bf16.msra.mxu0 0
    %146 = vmatprep.mubr.bf16.mxu0 0
    %147 = vmatmul.mubr.bf16.gmra.mrb[0].mxu0 %v105
    %v148 = vpop.f32.mrb[0].mxu0
    %v149 = vadd.f32 %v96, %v148
    %v150 = vpop.f32.mrb[0].mxu0
    %v151 = vpop.f32.mrb[0].mxu0
    %v152 = vpop.f32.mrb[0].mxu0
    %153 = vdwg.mxu0
    %v154 = vmax.f32 %v149, 0.0
    %v155 = vpack.c.bf16 %v154, %v154
    %v156 = vld [vmem:[#allocation7] sm:$0xf]
    %v157 = vld [vmem:[#allocation7 + $0x4] sm:$0xf]
    %v158 = vld [vmem:[#allocation7 + $0x8] sm:$0xf]
    %v159 = vld [vmem:[#allocation7 + $0xc] sm:$0xf]
    %v160 = vld [vmem:[#allocation7 + $0x10] sm:$0xf]
    %v161 = vld [vmem:[#allocation7 + $0x14] sm:$0xf]
    %v162 = vld [vmem:[#allocation7 + $0x18] sm:$0xf]
    %v163 = vld [vmem:[#allocation7 + $0x1c] sm:$0xf]
    %v164 = vld [vmem:[#allocation7 + $0x20] sm:$0xf]
    %v165 = vld [vmem:[#allocation7 + $0x24] sm:$0xf]
    %v166 = vld [vmem:[#allocation7 + $0x28] sm:$0xf]
    %v167 = vld [vmem:[#allocation7 + $0x2c] sm:$0xf]
    %v168 = vld [vmem:[#allocation7 + $0x30] sm:$0xf]
    %v169 = vld [vmem:[#allocation7 + $0x34] sm:$0xf]
    %v170 = vld [vmem:[#allocation7 + $0x38] sm:$0xf]
    %v171 = vld [vmem:[#allocation7 + $0x3c] sm:$0xf]
    %v172 = vld [vmem:[%s4] sm:$0x1]
    %v174 = vlaneseq
    %v175 = vshrl.u32 %v174, 7
    %v176 = vsub.s32 0, %v175
    %v177 = vrot.slane %v172, %v176
    %v195 = vunpack.c.l.b16 %v156
    %v196 = vunpack.c.l.b16 %v157
    %v197 = vunpack.c.l.b16 %v158
    %v198 = vunpack.c.l.b16 %v159
    %v199 = vunpack.c.l.b16 %v160
    %v200 = vunpack.c.l.b16 %v161
    %v201 = vunpack.c.l.b16 %v162
    %v202 = vunpack.c.l.b16 %v163
    %v203 = vunpack.c.l.b16 %v164
    %v204 = vunpack.c.l.b16 %v165
    %v205 = vunpack.c.l.b16 %v166
    %v206 = vunpack.c.l.b16 %v167
    %v207 = vunpack.c.l.b16 %v168
    %v208 = vunpack.c.l.b16 %v169
    %v209 = vunpack.c.l.b16 %v170
    %v210 = vunpack.c.l.b16 %v171
    %v211 = vpack.c.b16 %v196, %v195
    %v212 = vpack.c.b16 %v198, %v197
    %v213 = vpack.c.b16 %v200, %v199
    %v214 = vpack.c.b16 %v202, %v201
    %v215 = vpack.c.b16 %v204, %v203
    %v216 = vpack.c.b16 %v206, %v205
    %v217 = vpack.c.b16 %v208, %v207
    %v218 = vpack.c.b16 %v210, %v209
    %227 = vmatprep.subr.bf16.mxu0 0
    %228 = vmatpush1.bf16.msra.mxu0 %v211
    %229 = vmatprep.subr.bf16.mxu0 0
    %230 = vmatpush1.bf16.msra.mxu0 %v212
    %231 = vmatprep.subr.bf16.mxu0 0
    %232 = vmatpush1.bf16.msra.mxu0 %v213
    %233 = vmatprep.subr.bf16.mxu0 0
    %234 = vmatpush1.bf16.msra.mxu0 %v214
    %235 = vmatprep.subr.bf16.mxu0 0
    %236 = vmatpush1.bf16.msra.mxu0 %v215
    %237 = vmatprep.subr.bf16.mxu0 0
    %238 = vmatpush1.bf16.msra.mxu0 %v216
    %239 = vmatprep.subr.bf16.mxu0 0
    %240 = vmatpush1.bf16.msra.mxu0 %v217
    %241 = vmatprep.subr.bf16.mxu0 0
    %242 = vmatpush1.bf16.msra.mxu0 %v218
    %243 = vmatprep.subr.bf16.mxu0 0
    %244 = vmatpush1.bf16.msra.mxu0 0
    %245 = vmatprep.subr.bf16.mxu0 0
    %246 = vmatpush1.bf16.msra.mxu0 0
    %247 = vmatprep.subr.bf16.mxu0 0
    %248 = vmatpush1.bf16.msra.mxu0 0
    %249 = vmatprep.subr.bf16.mxu0 0
    %250 = vmatpush1.bf16.msra.mxu0 0
    %251 = vmatprep.subr.bf16.mxu0 0
    %252 = vmatpush1.bf16.msra.mxu0 0
    %253 = vmatprep.subr.bf16.mxu0 0
    %254 = vmatpush1.bf16.msra.mxu0 0
    %255 = vmatprep.subr.bf16.mxu0 0
    %256 = vmatpush1.bf16.msra.mxu0 0
    %257 = vmatprep.subr.bf16.mxu0 0
    %258 = vmatpush1.bf16.msra.mxu0 0
    %259 = vmatprep.mubr.bf16.mxu0 0
    %260 = vmatmul.mubr.bf16.gmra.mrb[0].mxu0 %v155
    %v261 = vpop.f32.mrb[0].mxu0
    %v262 = vadd.f32 %v177, %v261
    %v263 = vpop.f32.mrb[0].mxu0
    %v264 = vpop.f32.mrb[0].mxu0
    %v265 = vpop.f32.mrb[0].mxu0
    %266 = vdwg.mxu0
    %267 = vadd.xlane.f32.xlu0 %v262
    %v268 = vpop.xlane.xlu0 %267
    %v269 = vmul.f32 %v268, 0.03125
    %v270 = vsub.f32 %v262, %v269
    %v271 = vlaneseq
    %v272 = vand.u32 %v271, 127
    %vm273 = vcmp.lt.s32.totalorder %v272, 32
    %v274 = vsel %vm273, 1, 0
    %vm275 = vcmp.eq.s32.totalorder %v274, 1
    %v276 = vsel %vm275, %v270, 0.0
    %v277 = vmul.f32 %v276, %v276
    %278 = vadd.xlane.f32.xlu0 %v277
    %v279 = vpop.xlane.xlu0 %278
    %v280 = vmul.f32 %v279, 0.03125
    %v281 = vadd.f32 %v280, 1e-05
    %v282 = vrsqrt.pop %v281
    %v283 = vmul.f32 %v276, %v282
    %v284 = vld [vmem:[%s5] sm:$0x1]
    %v286 = vlaneseq
    %v287 = vshrl.u32 %v286, 7
    %v288 = vsub.s32 0, %v287
    %v289 = vrot.slane %v284, %v288
    %v291 = vmul.f32 %v283, %v289
    %v292 = vld [vmem:[%s6] sm:$0x1]
    %v294 = vlaneseq
    %v295 = vshrl.u32 %v294, 7
    %v296 = vsub.s32 0, %v295
    %v297 = vrot.slane %v292, %v296
    %v299 = vadd.f32 %v291, %v297
    %v300 = vmax.f32 %v299, 0.0
    %v301 = vpack.c.bf16 %v300, %v300
    %v302 = vld [vmem:[#allocation8] sm:$0xf]
    %v303 = vld [vmem:[#allocation8 + $0x4] sm:$0xf]
    %v304 = vld [vmem:[#allocation8 + $0x8] sm:$0xf]
    %v305 = vld [vmem:[#allocation8 + $0xc] sm:$0xf]
    %v306 = vld [vmem:[#allocation8 + $0x10] sm:$0xf]
    %v307 = vld [vmem:[#allocation8 + $0x14] sm:$0xf]
    %v308 = vld [vmem:[#allocation8 + $0x18] sm:$0xf]
    %v309 = vld [vmem:[#allocation8 + $0x1c] sm:$0xf]
    %v310 = vld [vmem:[#allocation8 + $0x20] sm:$0xf]
    %v311 = vld [vmem:[#allocation8 + $0x24] sm:$0xf]
    %v312 = vld [vmem:[#allocation8 + $0x28] sm:$0xf]
    %v313 = vld [vmem:[#allocation8 + $0x2c] sm:$0xf]
    %v314 = vld [vmem:[#allocation8 + $0x30] sm:$0xf]
    %v315 = vld [vmem:[#allocation8 + $0x34] sm:$0xf]
    %v316 = vld [vmem:[#allocation8 + $0x38] sm:$0xf]
    %v317 = vld [vmem:[#allocation8 + $0x3c] sm:$0xf]
    %v318 = vld [vmem:[%s8] sm:$0x1]
    %v320 = vlaneseq
    %v321 = vshrl.u32 %v320, 7
    %v322 = vsub.s32 0, %v321
    %v323 = vrot.slane %v318, %v322
    %v341 = vunpack.c.l.b16 %v302
    %v342 = vunpack.c.l.b16 %v303
    %v343 = vunpack.c.l.b16 %v304
    %v344 = vunpack.c.l.b16 %v305
    %v345 = vunpack.c.l.b16 %v306
    %v346 = vunpack.c.l.b16 %v307
    %v347 = vunpack.c.l.b16 %v308
    %v348 = vunpack.c.l.b16 %v309
    %v349 = vunpack.c.l.b16 %v310
    %v350 = vunpack.c.l.b16 %v311
    %v351 = vunpack.c.l.b16 %v312
    %v352 = vunpack.c.l.b16 %v313
    %v353 = vunpack.c.l.b16 %v314
    %v354 = vunpack.c.l.b16 %v315
    %v355 = vunpack.c.l.b16 %v316
    %v356 = vunpack.c.l.b16 %v317
    %v357 = vpack.c.b16 %v342, %v341
    %v358 = vpack.c.b16 %v344, %v343
    %v359 = vpack.c.b16 %v346, %v345
    %v360 = vpack.c.b16 %v348, %v347
    %v361 = vpack.c.b16 %v350, %v349
    %v362 = vpack.c.b16 %v352, %v351
    %v363 = vpack.c.b16 %v354, %v353
    %v364 = vpack.c.b16 %v356, %v355
    %373 = vmatprep.subr.bf16.mxu0 0
    %374 = vmatpush1.bf16.msra.mxu0 %v357
    %375 = vmatprep.subr.bf16.mxu0 0
    %376 = vmatpush1.bf16.msra.mxu0 %v358
    %377 = vmatprep.subr.bf16.mxu0 0
    %378 = vmatpush1.bf16.msra.mxu0 %v359
    %379 = vmatprep.subr.bf16.mxu0 0
    %380 = vmatpush1.bf16.msra.mxu0 %v360
    %381 = vmatprep.subr.bf16.mxu0 0
    %382 = vmatpush1.bf16.msra.mxu0 %v361
    %383 = vmatprep.subr.bf16.mxu0 0
    %384 = vmatpush1.bf16.msra.mxu0 %v362
    %385 = vmatprep.subr.bf16.mxu0 0
    %386 = vmatpush1.bf16.msra.mxu0 %v363
    %387 = vmatprep.subr.bf16.mxu0 0
    %388 = vmatpush1.bf16.msra.mxu0 %v364
    %389 = vmatprep.subr.bf16.mxu0 0
    %390 = vmatpush1.bf16.msra.mxu0 0
    %391 = vmatprep.subr.bf16.mxu0 0
    %392 = vmatpush1.bf16.msra.mxu0 0
    %393 = vmatprep.subr.bf16.mxu0 0
    %394 = vmatpush1.bf16.msra.mxu0 0
    %395 = vmatprep.subr.bf16.mxu0 0
    %396 = vmatpush1.bf16.msra.mxu0 0
    %397 = vmatprep.subr.bf16.mxu0 0
    %398 = vmatpush1.bf16.msra.mxu0 0
    %399 = vmatprep.subr.bf16.mxu0 0
    %400 = vmatpush1.bf16.msra.mxu0 0
    %401 = vmatprep.subr.bf16.mxu0 0
    %402 = vmatpush1.bf16.msra.mxu0 0
    %403 = vmatprep.subr.bf16.mxu0 0
    %404 = vmatpush1.bf16.msra.mxu0 0
    %405 = vmatprep.mubr.bf16.mxu0 0
    %406 = vmatmul.mubr.bf16.gmra.mrb[0].mxu0 %v301
    %v407 = vpop.f32.mrb[0].mxu0
    %v408 = vadd.f32 %v323, %v407
    %v409 = vpop.f32.mrb[0].mxu0
    %v410 = vpop.f32.mrb[0].mxu0
    %v411 = vpop.f32.mrb[0].mxu0
    %412 = vdwg.mxu0
    %413 = vst [vmem:[#allocation10] sm:$0xff] %v408
    // Predicated region
    $region54: #{tpu_custom_call.1} parent=1 // pred_check
      _
    $region55: #{tpu_custom_call.1} parent=1 // pred_check_branch
      %415 = sbr.rel (0) target = $region57
    $region56: #{tpu_custom_call.1} parent=1 // pred_region
      %s417 = ssub.s32 128, 128
      %418 = vsyncadd [#allocation4], %s417
      %s420 = sshll.u32 [#allocation10], 4
      %s421 = int_to_ptr.vmem [resolvable:$true] %s420
      %423 = dma.vmem_to_hbm [thread:$0]  %s421, 128, %s9, [#allocation4]
    $region57: #{tpu_custom_call.1} parent=1 // pred_fallthru
      _
    // Predicated region
    $region58: #{tpu_custom_call.1} parent=1 // pred_check
      _
    $region59: #{tpu_custom_call.1} parent=1 // pred_check_branch
      %425 = sbr.rel (0) target = $region61
    $region60: #{tpu_custom_call.1} parent=1 // pred_region
      %426 = dma.done [#allocation4], 128
    $region61: #{tpu_custom_call.1} parent=1 // pred_fallthru
      _
    %427 = vsyncpa [#allocation3], 1
    %428 = vsyncpa [#allocation6], 1
    %429 = vsyncpa [#allocation9], 1
    %430 = vsyncpa [#allocation4], 1

</llo_original>
